<compile_context>
chip_gen: v7x
topology: tpu7x:2x2x1
jax: 0.10.0
libtpu: 0.0.40
codegen_flags: <defaults>
</compile_context>

<pallas_src>
import math
import jax
import jax.numpy as jnp
from jax.experimental import pallas as pl
from jax.experimental.pallas import tpu as pltpu


def _round_up(x, m):
    return ((x + m - 1) // m) * m


# -----------------------------------------------------------------------------
# Fused kernel: compute PE for this row tile and add it to real/imag
# -----------------------------------------------------------------------------
def pe_add_kernel(params_ref, real_ref, imag_ref, out_r_ref, out_i_ref):
    # params_ref: (6, D) packed rows
    #   0: scaled_div (repeat-interleaved, clamp already applied)
    #   1: phase      [0, pi/2, 0, pi/2, ...]
    #   2: real_scale   3: real_shift   4: imag_scale   5: imag_shift
    # real/imag/out refs: (1, tile_s, D) block of the (B, S, D) arrays.
    _, ts, d = real_ref.shape

    row0 = pl.program_id(1) * ts  # global sequence offset of this row tile
    pos = (jax.lax.broadcasted_iota(jnp.int32, (ts, d), 0) + row0).astype(jnp.float32)

    angles = pos * params_ref[0:1, :] + params_ref[1:2, :]          # (tile_s, D)
    pe_r = jnp.sin(angles) * params_ref[2:3, :] + params_ref[3:4, :]
    pe_i = jnp.cos(angles) * params_ref[4:5, :] + params_ref[5:6, :]

    out_r_ref[...] = (real_ref[...].astype(jnp.float32) + pe_r[None]).astype(out_r_ref.dtype)
    out_i_ref[...] = (imag_ref[...].astype(jnp.float32) + pe_i[None]).astype(out_i_ref.dtype)


# -----------------------------------------------------------------------------
# Wrapper
# -----------------------------------------------------------------------------
def _choose_row_tile(S, D):
    """Largest sublane-aligned row tile whose lane-padded VMEM footprint is
    ~1 MiB per array (4 arrays x double-buffer ≈ 8 MiB, safe on v5e/v6e/v7x)."""
    d_lane = _round_up(D, 128)                    # VMEM lane padding
    target = max(8, min(8192, (1 << 20) // (d_lane * 4)))
    target = max(8, (target // 8) * 8)
    if S <= target:
        return S                                  # full seq dim (always legal)
    return target                                 # multiple of 8; ragged edge OK


def positional_encoding_pallas(real, imag, div_term_base, freq_scale,
                               real_scale, real_shift, imag_scale, imag_shift):
    """real, imag: (B, S, D). div_term_base/freq_scale: (D//2,). scales/shifts: (D,)."""
    B, S, D = real.shape
    f32 = jnp.float32

    # --- tiny parameter prep (param-sized, done once in the wrapper) ---------
    scaled_div = div_term_base.astype(f32) * jnp.maximum(freq_scale.astype(f32), 0.01)
    div_full = jnp.repeat(scaled_div, 2)                                  # (D,)
    phase = jnp.tile(jnp.array([0.0, math.pi / 2], f32), D // 2)          # (D,)
    params = jnp.stack(
        [div_full, phase,
         real_scale.reshape(-1).astype(f32), real_shift.reshape(-1).astype(f32),
         imag_scale.reshape(-1).astype(f32), imag_shift.reshape(-1).astype(f32)],
        axis=0)                                                           # (6, D)

    tile_s = _choose_row_tile(S, D)
    n_s = pl.cdiv(S, tile_s)

    data_spec = pl.BlockSpec((1, tile_s, D), lambda b, s: (b, s, 0))
    param_spec = pl.BlockSpec((6, D), lambda b, s: (0, 0))   # constant → single DMA

    out_r, out_i = pl.pallas_call(
        pe_add_kernel,
        out_shape=(jax.ShapeDtypeStruct((B, S, D), real.dtype),
                   jax.ShapeDtypeStruct((B, S, D), imag.dtype)),
        grid=(B, n_s),
        in_specs=[param_spec, data_spec, data_spec],
        out_specs=(data_spec, data_spec),
        compiler_params=pltpu.CompilerParams(
            dimension_semantics=("parallel", "parallel")),
    )(params, real, imag)

    return out_r, out_i


# -----------------------------------------------------------------------------
# Pure-JAX reference mirroring the PyTorch forward (learnable branch)
# -----------------------------------------------------------------------------
def positional_encoding_ref(real, imag, div_term_base, freq_scale,
                            real_scale, real_shift, imag_scale, imag_shift):
    B, S, D = real.shape
    scaled_div = div_term_base * jnp.maximum(freq_scale, 0.01)             # (D//2,)
    position = jnp.arange(S, dtype=jnp.float32)[:, None]                   # (S, 1)
    angles = position * scaled_div[None, :]                                # (S, D//2)
    pe_r = jnp.zeros((S, D), jnp.float32)
    pe_i = jnp.zeros((S, D), jnp.float32)
    pe_r = pe_r.at[:, 0::2].set(jnp.sin(angles)).at[:, 1::2].set(jnp.cos(angles))
    pe_i = pe_i.at[:, 0::2].set(jnp.cos(angles)).at[:, 1::2].set(-jnp.sin(angles))
    pe_r = pe_r * real_scale[None, :] + real_shift[None, :]
    pe_i = pe_i * imag_scale[None, :] + imag_shift[None, :]
    return real + pe_r[None, :, :], imag + pe_i[None, :, :]


if __name__ == "__main__":
    B, S, D = 2, 8, 32  # batch, seq_len, dim

    key = jax.random.PRNGKey(0)
    k_real, k_imag = jax.random.split(key)
    real = jax.random.normal(k_real, (B, S, D), dtype=jnp.float32)
    imag = jax.random.normal(k_imag, (B, S, D), dtype=jnp.float32)

    # Deterministic parameter init (shapes per PositionalEncoding.__init__).
    div_term_base = jnp.exp(jnp.arange(0, D, 2, dtype=jnp.float32)
                            * (-math.log(10000.0) / D))
    freq_scale = jnp.ones((D // 2,), jnp.float32) + 0.05 * jnp.arange(D // 2, dtype=jnp.float32) / (D // 2)
    real_scale = jnp.ones((D,), jnp.float32) + 0.01 * jnp.arange(D, dtype=jnp.float32)
    real_shift = jnp.zeros((D,), jnp.float32) + 0.02
    imag_scale = jnp.ones((D,), jnp.float32) - 0.01 * jnp.arange(D, dtype=jnp.float32) / D
    imag_shift = jnp.zeros((D,), jnp.float32) - 0.03

    out_r, out_i = positional_encoding_pallas(
        real, imag, div_term_base, freq_scale,
        real_scale, real_shift, imag_scale, imag_shift)
    jax.block_until_ready((out_r, out_i))

    ref_r, ref_i = positional_encoding_ref(
        real, imag, div_term_base, freq_scale,
        real_scale, real_shift, imag_scale, imag_shift)

    assert jnp.allclose(out_r, ref_r, atol=1e-4, rtol=1e-4), "real output mismatch"
    assert jnp.allclose(out_i, ref_i, atol=1e-4, rtol=1e-4), "imag output mismatch"

    print("KERNEL_OK")
</pallas_src>

<mosaic_0001>
module attributes {stable_mosaic.version = 11 : i64} {
  func.func @pe_add_kernel(%arg0: i32, %arg1: i32, %arg2: memref<6x32xf32, #tpu.memory_space<vmem>>, %arg3: memref<1x8x32xf32, #tpu.memory_space<vmem>>, %arg4: memref<1x8x32xf32, #tpu.memory_space<vmem>>, %arg5: memref<1x8x32xf32, #tpu.memory_space<vmem>>, %arg6: memref<1x8x32xf32, #tpu.memory_space<vmem>>) attributes {dimension_semantics = [#tpu.dimension_semantics<parallel>, #tpu.dimension_semantics<parallel>], iteration_bounds = array<i64: 2, 1>, scalar_prefetch = 0 : i64, scratch_operands = 0 : i64, tpu.core_type = #tpu.core_type<tc>, window_params = [{pipeline_mode = #tpu.pipeline_mode<synchronous>, transform_indices = @transform_0, window_bounds = array<i64: 6, 32>}, {transform_indices = @transform_1, window_bounds = array<i64: 1, 8, 32>}, {transform_indices = @transform_2, window_bounds = array<i64: 1, 8, 32>}, {transform_indices = @transform_3, window_bounds = array<i64: 1, 8, 32>}, {transform_indices = @transform_4, window_bounds = array<i64: 1, 8, 32>}]} {
    %c8_i32 = arith.constant 8 : i32
    %0 = arith.muli %arg1, %c8_i32 : i32
    %1 = tpu.iota {dimensions = array<i32: 0>} : vector<8x32xi32>
    %2 = vector.broadcast %0 : i32 to vector<8x32xi32>
    %3 = arith.addi %1, %2 : vector<8x32xi32>
    %4 = arith.sitofp %3 : vector<8x32xi32> to vector<8x32xf32>
    %c0 = arith.constant 0 : index
    %c0_0 = arith.constant 0 : index
    %5 = vector.load %arg2[%c0, %c0_0] : memref<6x32xf32, #tpu.memory_space<vmem>>, vector<1x32xf32>
    %6 = vector.broadcast %5 : vector<1x32xf32> to vector<8x32xf32>
    %7 = arith.mulf %4, %6 : vector<8x32xf32>
    %c1 = arith.constant 1 : index
    %c0_1 = arith.constant 0 : index
    %8 = vector.load %arg2[%c1, %c0_1] : memref<6x32xf32, #tpu.memory_space<vmem>>, vector<1x32xf32>
    %9 = vector.broadcast %8 : vector<1x32xf32> to vector<8x32xf32>
    %10 = arith.addf %7, %9 : vector<8x32xf32>
    %11 = math.sin %10 : vector<8x32xf32>
    %c2 = arith.constant 2 : index
    %c0_2 = arith.constant 0 : index
    %12 = vector.load %arg2[%c2, %c0_2] : memref<6x32xf32, #tpu.memory_space<vmem>>, vector<1x32xf32>
    %13 = vector.broadcast %12 : vector<1x32xf32> to vector<8x32xf32>
    %14 = arith.mulf %11, %13 : vector<8x32xf32>
    %c3 = arith.constant 3 : index
    %c0_3 = arith.constant 0 : index
    %15 = vector.load %arg2[%c3, %c0_3] : memref<6x32xf32, #tpu.memory_space<vmem>>, vector<1x32xf32>
    %16 = vector.broadcast %15 : vector<1x32xf32> to vector<8x32xf32>
    %17 = arith.addf %14, %16 : vector<8x32xf32>
    %18 = math.cos %10 : vector<8x32xf32>
    %c4 = arith.constant 4 : index
    %c0_4 = arith.constant 0 : index
    %19 = vector.load %arg2[%c4, %c0_4] : memref<6x32xf32, #tpu.memory_space<vmem>>, vector<1x32xf32>
    %20 = vector.broadcast %19 : vector<1x32xf32> to vector<8x32xf32>
    %21 = arith.mulf %18, %20 : vector<8x32xf32>
    %c5 = arith.constant 5 : index
    %c0_5 = arith.constant 0 : index
    %22 = vector.load %arg2[%c5, %c0_5] : memref<6x32xf32, #tpu.memory_space<vmem>>, vector<1x32xf32>
    %23 = vector.broadcast %22 : vector<1x32xf32> to vector<8x32xf32>
    %24 = arith.addf %21, %23 : vector<8x32xf32>
    %c0_6 = arith.constant 0 : index
    %c0_7 = arith.constant 0 : index
    %c0_8 = arith.constant 0 : index
    %25 = vector.load %arg3[%c0_6, %c0_7, %c0_8] : memref<1x8x32xf32, #tpu.memory_space<vmem>>, vector<1x8x32xf32>
    %26 = vector.shape_cast %17 : vector<8x32xf32> to vector<1x8x32xf32>
    %27 = arith.addf %25, %26 : vector<1x8x32xf32>
    %c0_9 = arith.constant 0 : index
    %c0_10 = arith.constant 0 : index
    %c0_11 = arith.constant 0 : index
    %28 = vector.load %arg5[%c0_9, %c0_10, %c0_11] : memref<1x8x32xf32, #tpu.memory_space<vmem>>, vector<1x8x32xf32>
    tpu.vector_store %arg5[%c0_9, %c0_10, %c0_11], %27 {strides = array<i32>} : memref<1x8x32xf32, #tpu.memory_space<vmem>>, vector<1x8x32xf32>,
    %c0_12 = arith.constant 0 : index
    %c0_13 = arith.constant 0 : index
    %c0_14 = arith.constant 0 : index
    %29 = vector.load %arg4[%c0_12, %c0_13, %c0_14] : memref<1x8x32xf32, #tpu.memory_space<vmem>>, vector<1x8x32xf32>
    %30 = vector.shape_cast %24 : vector<8x32xf32> to vector<1x8x32xf32>
    %31 = arith.addf %29, %30 : vector<1x8x32xf32>
    %c0_15 = arith.constant 0 : index
    %c0_16 = arith.constant 0 : index
    %c0_17 = arith.constant 0 : index
    %32 = vector.load %arg6[%c0_15, %c0_16, %c0_17] : memref<1x8x32xf32, #tpu.memory_space<vmem>>, vector<1x8x32xf32>
    tpu.vector_store %arg6[%c0_15, %c0_16, %c0_17], %31 {strides = array<i32>} : memref<1x8x32xf32, #tpu.memory_space<vmem>>, vector<1x8x32xf32>,
    return
  }
  func.func @transform_0(%arg0: i32, %arg1: i32) -> (i32, i32) {
    %c0_i32 = arith.constant 0 : i32
    %c0_i32_0 = arith.constant 0 : i32
    %c0_i32_1 = arith.constant 0 : i32
    return %c0_i32, %c0_i32_0 : i32, i32
  }
  func.func @transform_1(%arg0: i32, %arg1: i32) -> (i32, i32, i32) {
    %c0_i32 = arith.constant 0 : i32
    %c0_i32_0 = arith.constant 0 : i32
    return %arg0, %arg1, %c0_i32 : i32, i32, i32
  }
  func.func @transform_2(%arg0: i32, %arg1: i32) -> (i32, i32, i32) {
    %c0_i32 = arith.constant 0 : i32
    %c0_i32_0 = arith.constant 0 : i32
    return %arg0, %arg1, %c0_i32 : i32, i32, i32
  }
  func.func @transform_3(%arg0: i32, %arg1: i32) -> (i32, i32, i32) {
    %c0_i32 = arith.constant 0 : i32
    %c0_i32_0 = arith.constant 0 : i32
    return %arg0, %arg1, %c0_i32 : i32, i32, i32
  }
  func.func @transform_4(%arg0: i32, %arg1: i32) -> (i32, i32, i32) {
    %c0_i32 = arith.constant 0 : i32
    %c0_i32_0 = arith.constant 0 : i32
    return %arg0, %arg1, %c0_i32 : i32, i32, i32
  }
}

</mosaic_0001>

<llo_original>
// kernel: tpu_custom_call.1
$region0: #{tpu_custom_call.1}
  #allocation0 [shape = 'u32[]', space=smem, size = 0x4, offset = 0x4, fixed_abs, tag = 'smem constant byte address 0x4 - core index']
  #allocation1 [shape = 'u32[144,128]{1,0:T(1,128)}', space=vmem, size = 0x12000, scoped, tag = 'internal scratch']
  %s0 = inlined_call_operand.hbm [shape: f32[6,32], index: 0, kind: input, shape index: {}]
  %s1 = inlined_call_operand.hbm [shape: f32[2,8,32], index: 1, kind: input, shape index: {}]
  %s2 = inlined_call_operand.hbm [shape: f32[2,8,32], index: 2, kind: input, shape index: {}]
  %s3 = inlined_call_operand.hbm [shape: f32[2,8,32], index: 3, kind: output, shape index: {0}]
  %s4 = inlined_call_operand.hbm [shape: f32[2,8,32], index: 4, kind: output, shape index: {1}]
  %5 = xla_tuple %s3, %s4
  %s6 = sld [smem:[#allocation0]]
  $region65: #{tpu_custom_call.1} parent=0
    _
  %s8 = ssub.s32 1, %s6
  %s9 = scalar_select 0, %s8, %s6
  $region1: #{tpu_custom_call.1} parent=0
    #allocation2 [shape = 'u8[4096]{0}', space=vmem, size = 0x1000, scoped, tag = 'input window, operand 0, single buffered']
    #allocation3 [shape = 's32[2]{0}', space=sflag, size = 0x8, scoped, tag = 'scoped memory for tpu_custom_call.1']
    #allocation4 [shape = 's32[2]{0}', space=sflag, size = 0x8, scoped, tag = 'scoped memory for tpu_custom_call.1']
    #allocation5 [shape = 'u8[8192]{0}', space=vmem, size = 0x2000, scoped, tag = 'input window, operand 1']
    #allocation6 [shape = 's32[2]{0}', space=sflag, size = 0x8, scoped, tag = 'scoped memory for tpu_custom_call.1']
    #allocation7 [shape = 'u8[8192]{0}', space=vmem, size = 0x2000, scoped, tag = 'input window, operand 2']
    #allocation8 [shape = 'u8[8192]{0}', space=vmem, size = 0x2000, scoped, tag = 'output window, operand 0']
    #allocation9 [shape = 'u8[8192]{0}', space=vmem, size = 0x2000, scoped, tag = 'output window, operand 1']
    #allocation10 [shape = 's32[2]{0}', space=sflag, size = 0x8, scoped, tag = 'scoped memory for tpu_custom_call.1']
    %10 = vsyncpa [#allocation3], 0
    %11 = vsyncpa [#allocation6], 0
    %s12 = scalar_lea.sflag [#allocation6], 1
    %13 = vsyncpa %s12, 0
    %14 = vsyncpa [#allocation4], 0
    %s15 = scalar_lea.sflag [#allocation4], 1
    %16 = vsyncpa %s15, 0
    %17 = vsyncpa [#allocation10], 0
    %s18 = scalar_lea.sflag [#allocation10], 1
    %19 = vsyncpa %s18, 0
    loop: start=0, step=1, limit=4
    $region2: #{tpu_custom_call.1} parent=1 // loop_pre_header
      _
    $region3: #{tpu_custom_call.1} parent=1 // loop_header
      %s21 = sphi 0, %s25
      %p22 = scmp.ge.s32.totalorder %s21, 4
      %s28 = sphi 0, %s40
      %s29 = sphi 0, %s36
      %s30 = sphi 0, %s28
      %s31 = sphi 0, %s29
      %s32 = sphi 0, %s30
      %s33 = sphi 0, %s31
      %s41 = sphi 0, %s41
      %s43 = sphi 0, %s41
      %s44 = sphi 0, %s43
      %s58 = sphi 0, %s44
      %s66 = sphi 0, %s68
      %s69 = sphi 0, %s66
      %s70 = sphi 0, %s69
      %s86 = sphi 0, %s70
      %s94 = sphi 0, %s96
      %s97 = sphi 0, %s94
      %s98 = sphi 0, %s97
      %s114 = sphi 0, %s98
      %s122 = sphi 0, %s124
      %s125 = sphi 0, %s122
      %s126 = sphi 0, %s125
      %s142 = sphi 0, %s126
      %s150 = sphi 0, %s152
      %s153 = sphi 0, %s150
      %s154 = sphi 0, %s153
      %s170 = sphi 0, %s154
    $region4: #{tpu_custom_call.1} parent=1 // loop_header_branch
      %24 = sbr.rel (%p22) target = $region8
    $region5: #{tpu_custom_call.1} parent=1 // loop_body
      %s26 = ssub.s32 %s21, 1
      %s27 = ssub.s32 %s21, 2
      %s34 = sadd.s32 1, %s29
      %p35 = scmp.ge.s32.totalorder %s34, 1
      %s36 = scalar_select %p35, 0, %s34
      %s37 = sadd.s32 1, %s28
      %s38 = scalar_select %p35, %s37, %s28
      %p39 = scmp.ge.s32.totalorder %s38, 2
      %s40 = scalar_select %p39, 0, %s38
      %s42 = sadd.s32 %s41, 1
      %p45 = scmp.eq.s32.totalorder %s21, 1
      %p46 = scmp.ne.s32.totalorder %s41, %s43
      %p47 = scmp.eq.s32.totalorder %s21, 0
      %p48 = por %p46, %p47
      %p49 = scmp.ne.s32.totalorder %s41, %s43
      %p50 = scmp.eq.s32.totalorder %s26, 1
      %p51 = por %p49, %p50
      %p52 = scmp.ne.s32.totalorder %s43, %s44
      %p53 = scmp.eq.s32.totalorder %s26, 0
      %p54 = por %p52, %p53
      %p55 = scmp.ne.s32.totalorder %s43, %s44
      %p56 = scmp.eq.s32.totalorder %s27, 1
      %p57 = por %p55, %p56
      %p59 = scmp.ne.s32.totalorder %s44, %s58
      %p60 = scmp.eq.s32.totalorder %s27, 0
      %p61 = por %p59, %p60
      %s62 = ssub.s32 %s28, %s40
      %s63 = ssub.s32 %s29, %s36
      %s64 = sor.u32 %s62, %s63
      %p65 = scmp.eq.s32.totalorder %s64, 0
      %s67 = sadd.s32 %s66, 1
      %s68 = scalar_select %p65, %s66, %s67
      %p71 = pneg %p65
      %p72 = scmp.eq.s32.totalorder %s21, 1
      %p73 = por %p71, %p72
      %p74 = scmp.ne.s32.totalorder %s66, %s69
      %p75 = scmp.eq.s32.totalorder %s21, 0
      %p76 = por %p74, %p75
      %p77 = scmp.ne.s32.totalorder %s66, %s69
      %p78 = scmp.eq.s32.totalorder %s26, 1
      %p79 = por %p77, %p78
      %p80 = scmp.ne.s32.totalorder %s69, %s70
      %p81 = scmp.eq.s32.totalorder %s26, 0
      %p82 = por %p80, %p81
      %p83 = scmp.ne.s32.totalorder %s69, %s70
      %p84 = scmp.eq.s32.totalorder %s27, 1
      %p85 = por %p83, %p84
      %p87 = scmp.ne.s32.totalorder %s70, %s86
      %p88 = scmp.eq.s32.totalorder %s27, 0
      %p89 = por %p87, %p88
      %s90 = ssub.s32 %s28, %s40
      %s91 = ssub.s32 %s29, %s36
      %s92 = sor.u32 %s90, %s91
      %p93 = scmp.eq.s32.totalorder %s92, 0
      %s95 = sadd.s32 %s94, 1
      %s96 = scalar_select %p93, %s94, %s95
      %p99 = pneg %p93
      %p100 = scmp.eq.s32.totalorder %s21, 1
      %p101 = por %p99, %p100
      %p102 = scmp.ne.s32.totalorder %s94, %s97
      %p103 = scmp.eq.s32.totalorder %s21, 0
      %p104 = por %p102, %p103
      %p105 = scmp.ne.s32.totalorder %s94, %s97
      %p106 = scmp.eq.s32.totalorder %s26, 1
      %p107 = por %p105, %p106
      %p108 = scmp.ne.s32.totalorder %s97, %s98
      %p109 = scmp.eq.s32.totalorder %s26, 0
      %p110 = por %p108, %p109
      %p111 = scmp.ne.s32.totalorder %s97, %s98
      %p112 = scmp.eq.s32.totalorder %s27, 1
      %p113 = por %p111, %p112
      %p115 = scmp.ne.s32.totalorder %s98, %s114
      %p116 = scmp.eq.s32.totalorder %s27, 0
      %p117 = por %p115, %p116
      %s118 = ssub.s32 %s28, %s40
      %s119 = ssub.s32 %s29, %s36
      %s120 = sor.u32 %s118, %s119
      %p121 = scmp.eq.s32.totalorder %s120, 0
      %s123 = sadd.s32 %s122, 1
      %s124 = scalar_select %p121, %s122, %s123
      %p127 = pneg %p121
      %p128 = scmp.eq.s32.totalorder %s21, 1
      %p129 = por %p127, %p128
      %p130 = scmp.ne.s32.totalorder %s122, %s125
      %p131 = scmp.eq.s32.totalorder %s21, 0
      %p132 = por %p130, %p131
      %p133 = scmp.ne.s32.totalorder %s122, %s125
      %p134 = scmp.eq.s32.totalorder %s26, 1
      %p135 = por %p133, %p134
      %p136 = scmp.ne.s32.totalorder %s125, %s126
      %p137 = scmp.eq.s32.totalorder %s26, 0
      %p138 = por %p136, %p137
      %p139 = scmp.ne.s32.totalorder %s125, %s126
      %p140 = scmp.eq.s32.totalorder %s27, 1
      %p141 = por %p139, %p140
      %p143 = scmp.ne.s32.totalorder %s126, %s142
      %p144 = scmp.eq.s32.totalorder %s27, 0
      %p145 = por %p143, %p144
      %s146 = ssub.s32 %s28, %s40
      %s147 = ssub.s32 %s29, %s36
      %s148 = sor.u32 %s146, %s147
      %p149 = scmp.eq.s32.totalorder %s148, 0
      %s151 = sadd.s32 %s150, 1
      %s152 = scalar_select %p149, %s150, %s151
      %p155 = pneg %p149
      %p156 = scmp.eq.s32.totalorder %s21, 1
      %p157 = por %p155, %p156
      %p158 = scmp.ne.s32.totalorder %s150, %s153
      %p159 = scmp.eq.s32.totalorder %s21, 0
      %p160 = por %p158, %p159
      %p161 = scmp.ne.s32.totalorder %s150, %s153
      %p162 = scmp.eq.s32.totalorder %s26, 1
      %p163 = por %p161, %p162
      %p164 = scmp.ne.s32.totalorder %s153, %s154
      %p165 = scmp.eq.s32.totalorder %s26, 0
      %p166 = por %p164, %p165
      %p167 = scmp.ne.s32.totalorder %s153, %s154
      %p168 = scmp.eq.s32.totalorder %s27, 1
      %p169 = por %p167, %p168
      %p171 = scmp.ne.s32.totalorder %s154, %s170
      %p172 = scmp.eq.s32.totalorder %s27, 0
      %p173 = por %p171, %p172
      %p174 = scmp.le.s32.totalorder 1, %s21
      %p175 = scmp.lt.s32.totalorder %s21, 3
      %p176 = pnand %p174, %p175
      %p177 = pneg %p176
      // Predicated region
      $region9: #{tpu_custom_call.1} parent=5 // pred_check
        _
      $region10: #{tpu_custom_call.1} parent=5 // pred_check_branch
        %179 = sbr.rel (%p176) target = $region12
      $region11: #{tpu_custom_call.1} parent=5 // pred_region
        %s180 = ssub.s32 %s21, 1
        // Predicated region
        $region13: #{tpu_custom_call.1} parent=11 // pred_check
          %p181 = pneg %p54
        $region14: #{tpu_custom_call.1} parent=11 // pred_check_branch
          %183 = sbr.rel (%p181) target = $region16
        $region15: #{tpu_custom_call.1} parent=11 // pred_region
          %s185 = ssub.s32 128, 128
          %186 = vsyncadd [#allocation3], %s185
          %s188 = sshll.u32 [#allocation2], 4
          %s189 = int_to_ptr.vmem [resolvable:$true] %s188
          %191 = dma.hbm_to_vmem [thread:$0]  %s0, 128, %s189, [#allocation3]
        $region16: #{tpu_custom_call.1} parent=11 // pred_fallthru
          _
      $region12: #{tpu_custom_call.1} parent=5 // pred_fallthru
        _
      %p192 = scmp.lt.s32.totalorder %s21, 2
      // Predicated region
      $region17: #{tpu_custom_call.1} parent=5 // pred_check
        %p193 = pneg %p192
      $region18: #{tpu_custom_call.1} parent=5 // pred_check_branch
        %195 = sbr.rel (%p193) target = $region20
      $region19: #{tpu_custom_call.1} parent=5 // pred_region
        // Predicated region
        $region21: #{tpu_custom_call.1} parent=19 // pred_check
          %p196 = pneg %p76
        $region22: #{tpu_custom_call.1} parent=19 // pred_check_branch
          %198 = sbr.rel (%p196) target = $region24
        $region23: #{tpu_custom_call.1} parent=19 // pred_region
          %s199 = sand.u32 %s21, 1
          %s200 = scalar_lea.sflag [#allocation6], %s199
          %s201 = sand.u32 %s66, 1
          %s202 = smul.addr %s201, 8
          %s203 = scalar_lea.vmem [#allocation5], %s202
          %s205 = ssub.s32 128, 128
          %206 = vsyncadd %s200, %s205
          %s207 = sadd.s32 %s29, %s28
          %s208 = smul.addr %s207, 128
          %s209 = scalar_lea.hbm %s1, %s208
          %s211 = sshll.u32 %s203, 4
          %s212 = int_to_ptr.vmem [resolvable:$true] %s211
          %214 = dma.hbm_to_vmem [thread:$0]  %s209, 128, %s212, %s200
        $region24: #{tpu_custom_call.1} parent=19 // pred_fallthru
          _
        // Predicated region
        $region25: #{tpu_custom_call.1} parent=19 // pred_check
          %p215 = pneg %p104
        $region26: #{tpu_custom_call.1} parent=19 // pred_check_branch
          %217 = sbr.rel (%p215) target = $region28
        $region27: #{tpu_custom_call.1} parent=19 // pred_region
          %s218 = sand.u32 %s21, 1
          %s219 = scalar_lea.sflag [#allocation6], %s218
          %s220 = sand.u32 %s94, 1
          %s221 = smul.addr %s220, 8
          %s222 = scalar_lea.vmem [#allocation7], %s221
          %s224 = ssub.s32 128, 128
          %225 = vsyncadd %s219, %s224
          %s226 = sadd.s32 %s29, %s28
          %s227 = smul.addr %s226, 128
          %s228 = scalar_lea.hbm %s2, %s227
          %s230 = sshll.u32 %s222, 4
          %s231 = int_to_ptr.vmem [resolvable:$true] %s230
          %233 = dma.hbm_to_vmem [thread:$0]  %s228, 128, %s231, %s219
        $region28: #{tpu_custom_call.1} parent=19 // pred_fallthru
          _
      $region20: #{tpu_custom_call.1} parent=5 // pred_fallthru
        _
      %p234 = scmp.le.s32.totalorder 1, %s21
      %p235 = scmp.lt.s32.totalorder %s21, 3
      %p236 = pnand %p234, %p235
      %p237 = pneg %p236
      // Predicated region
      $region29: #{tpu_custom_call.1} parent=5 // pred_check
        _
      $region30: #{tpu_custom_call.1} parent=5 // pred_check_branch
        %239 = sbr.rel (%p236) target = $region32
      $region31: #{tpu_custom_call.1} parent=5 // pred_region
        %s240 = ssub.s32 %s21, 1
        // Predicated region
        $region33: #{tpu_custom_call.1} parent=31 // pred_check
          %p241 = pneg %p54
        $region34: #{tpu_custom_call.1} parent=31 // pred_check_branch
          %243 = sbr.rel (%p241) target = $region36
        $region35: #{tpu_custom_call.1} parent=31 // pred_region
          %244 = dma.done [#allocation3], 128
        $region36: #{tpu_custom_call.1} parent=31 // pred_fallthru
          _
        %s245 = sand.u32 %s26, 1
        %s246 = scalar_lea.sflag [#allocation6], %s245
        %s247 = sand.u32 %s69, 1
        %s248 = smul.addr %s247, 8
        %s249 = scalar_lea.vmem [#allocation5], %s248
        // Predicated region
        $region37: #{tpu_custom_call.1} parent=31 // pred_check
          %p250 = pneg %p82
        $region38: #{tpu_custom_call.1} parent=31 // pred_check_branch
          %252 = sbr.rel (%p250) target = $region40
        $region39: #{tpu_custom_call.1} parent=31 // pred_region
          %253 = dma.done %s246, 128
        $region40: #{tpu_custom_call.1} parent=31 // pred_fallthru
          _
        %s254 = sand.u32 %s26, 1
        %s255 = scalar_lea.sflag [#allocation6], %s254
        %s256 = sand.u32 %s97, 1
        %s257 = smul.addr %s256, 8
        %s258 = scalar_lea.vmem [#allocation7], %s257
        // Predicated region
        $region41: #{tpu_custom_call.1} parent=31 // pred_check
          %p259 = pneg %p110
        $region42: #{tpu_custom_call.1} parent=31 // pred_check_branch
          %261 = sbr.rel (%p259) target = $region44
        $region43: #{tpu_custom_call.1} parent=31 // pred_region
          %262 = dma.done %s255, 128
        $region44: #{tpu_custom_call.1} parent=31 // pred_fallthru
          _
        %p263 = pneg %p54
        %p264 = pneg %p51
        %s265 = sand.u32 %s26, 1
        %s266 = scalar_lea.sflag [#allocation6], %s265
        %s267 = sand.u32 %s69, 1
        %s268 = smul.addr %s267, 8
        %s269 = scalar_lea.vmem [#allocation5], %s268
        %p270 = pneg %p82
        %p271 = pneg %p79
        %s272 = sand.u32 %s26, 1
        %s273 = scalar_lea.sflag [#allocation6], %s272
        %s274 = sand.u32 %s97, 1
        %s275 = smul.addr %s274, 8
        %s276 = scalar_lea.vmem [#allocation7], %s275
        %p277 = pneg %p110
        %p278 = pneg %p107
        %p279 = pneg %p138
        %p280 = pneg %p135
        %s281 = sand.u32 %s125, 1
        %s282 = scalar_lea.sflag [#allocation4], %s281
        %s283 = sand.u32 %s125, 1
        %s284 = smul.addr %s283, 8
        %s285 = scalar_lea.vmem [#allocation8], %s284
        %p286 = pneg %p166
        %p287 = pneg %p163
        %s288 = sand.u32 %s153, 1
        %s289 = scalar_lea.sflag [#allocation10], %s288
        %s290 = sand.u32 %s153, 1
        %s291 = smul.addr %s290, 8
        %s292 = scalar_lea.vmem [#allocation9], %s291
        %s293 = smul.u32 %s31, 8
        %v294 = vlaneseq
        %v295 = vshrl.u32 %v294, 7
        %v296 = vstv %s293
        %v297 = vadd.s32 %v295, %v296
        %v298 = vcvt.s32.f32 %v297
        %v299 = vld [vmem:[#allocation2] sm:$0x1]
        %v300 = vlaneseq
        %v301 = vshrl.u32 %v300, 7
        %v302 = vsub.s32 0, %v301
        %v303 = vrot.slane %v299, %v302
        %v304 = vmul.f32 %v298, %v303
        %v305 = vld [vmem:[#allocation2 + $0x1] sm:$0x1]
        %v306 = vlaneseq
        %v307 = vshrl.u32 %v306, 7
        %v308 = vsub.s32 0, %v307
        %v309 = vrot.slane %v305, %v308
        %v310 = vadd.f32 %v304, %v309
        %v311 = vand.u32 2147483647, %v310
        %vm312 = vcmp.le.f32.partialorder %v311, 0.7853982
        %vm313 = vcmp.lt.s32.totalorder %v310, 0
        %v314 = vand.u32 %v310, 2139095040
        %v315 = vshrl.u32 %v314, 23
        %v316 = vsub.s32 %v315, 127
        %v317 = vand.u32 2147483647, %v310
        %v318 = vand.u32 %v317, 8388607
        %v319 = vor.u32 %v318, 8388608
        %v320 = vsub.s32 0, %v319
        %v321 = vadd.s32 %v316, 1
        %vm322 = vcmp.gt.s32.totalorder %v321, 0
        %v323 = vsel %vm322, %v321, 0
        %v324 = vshrl.u32 %v323, 5
        %v325 = vand.u32 %v323, 31
        %v326 = vsub.s32 32, %v325
        %v327 = vshrl.u32 683565275, %v326
        %v328 = vshll.u32 683565275, %v325
        %v329 = vshrl.u32 2475754826, %v326
        %v330 = vor.u32 %v328, %v329
        %v331 = vshll.u32 2475754826, %v325
        %v332 = vshrl.u32 2131351028, %v326
        %v333 = vor.u32 %v331, %v332
        %v334 = vshll.u32 2131351028, %v325
        %v335 = vshrl.u32 2102212464, %v326
        %v336 = vor.u32 %v334, %v335
        %v337 = vshll.u32 2102212464, %v325
        %v338 = vshrl.u32 920167782, %v326
        %v339 = vor.u32 %v337, %v338
        %v340 = vshll.u32 920167782, %v325
        %v341 = vshrl.u32 1326507024, %v326
        %v342 = vor.u32 %v340, %v341
        %vm343 = vcmp.lt.s32.totalorder %v324, 1
        %vm344 = vcmp.lt.s32.totalorder %v324, 2
        %vm345 = vcmp.lt.s32.totalorder %v324, 3
        %vm346 = vcmp.lt.s32.totalorder %v324, 4
        %v347 = vsel %vm343, %v327, %v330
        %v348 = vsel %vm346, %v336, 2102212464
        %v349 = vsel %vm345, %v333, %v348
        %v350 = vsel %vm344, %v347, %v349
        %v351 = vsel %vm343, %v330, %v333
        %v352 = vsel %vm346, %v339, 920167782
        %v353 = vsel %vm345, %v336, %v352
        %v354 = vsel %vm344, %v351, %v353
        %v355 = vsel %vm343, %v333, %v336
        %v356 = vsel %vm346, %v342, 1326507024
        %v357 = vsel %vm345, %v339, %v356
        %v358 = vsel %vm344, %v355, %v357
        %v359 = vshll.u32 %v319, 8
        %v360 = vmul.u32.u64.compose %v359, %v358
        %v361 = vextract.low.u32 %v360
        %v362 = vextract.high.u32 %v360
        %v363 = vmul.u32.u64.compose %v359, %v354
        %v364 = vextract.low.u32 %v363
        %v365 = vextract.high.u32 %v363
        %v366 = vmul.u32 %v359, %v350
        %v367 = vadd.s32 %v362, %v364
        %vm368 = vc.u32 %v362, %v364
        %v369 = vadd.s32 %v365, 1
        %v370 = vsel %vm368, %v369, %v365
        %v371 = vadd.s32 %v366, %v370
        %v372 = vadd.s32 %v371, 536870912
        %v373 = vshrl.u32 %v372, 30
        %v374 = vshll.u32 %v373, 30
        %v375 = vsub.s32 %v371, %v374
        %vm376 = vcmp.lt.s32.totalorder %v375, 0
        %v377 = vsub.s32 0, %v375
        %v378 = vsel %vm376, %v377, %v375
        %v379 = vclz %v378
        %v380 = vsub.s32 %v379, 2
        %vm381 = vcmp.gt.s32.totalorder 0, %v380
        %v382 = vsel %vm381, 0, %v380
        %v383 = vsub.s32 32, %v382
        %v384 = vshll.u32 %v375, %v382
        %v385 = vshrl.u32 %v367, %v383
        %v386 = vor.u32 %v384, %v385
        %v387 = vsub.s32 4294967266, %v382
        %v388 = vadd.s32 %v387, 127
        %v389 = vshll.u32 %v388, 23
        %v390 = vor.u32 4788187, %v389
        %v391 = vand.u32 2147483647, %v390
        %v393 = vcvt.s32.f32 %v386
        %v394 = vmul.f32 %v393, %v391
        %v395 = vxor.u32 %v394, 2147483648
        %v396 = vsel %vm313, %v395, %v394
        %v397 = vsub.s32 4, %v373
        %v398 = vsel %vm313, %v397, %v373
        %v399 = vsel %vm312, %v310, %v396
        %v400 = vsel %vm312, 0, %v398
        %v401 = vcosq.f32.pop %v399
        %v402 = vsinq.f32.pop %v399
        %vm403 = vweird.f32 %v310
        %v404 = vadd.s32 %v400, 3
        %v405 = vand.u32 %v404, 3
        %vm406 = vcmp.lt.s32.totalorder %v405, 2
        %vm407 = vcmp.eq.s32.totalorder %v405, 0
        %v408 = vxor.u32 %v402, 2147483648
        %v409 = vsel %vm407, %v401, %v408
        %vm410 = vcmp.eq.s32.totalorder %v405, 2
        %v411 = vxor.u32 %v401, 2147483648
        %v412 = vsel %vm410, %v411, %v402
        %v413 = vsel %vm406, %v409, %v412
        %v414 = vsel %vm403, nan, %v413
        %v415 = vld [vmem:[#allocation2 + $0x2] sm:$0x1]
        %v416 = vlaneseq
        %v417 = vshrl.u32 %v416, 7
        %v418 = vsub.s32 0, %v417
        %v419 = vrot.slane %v415, %v418
        %v420 = vmul.f32 %v414, %v419
        %v421 = vld [vmem:[#allocation2 + $0x3] sm:$0x1]
        %v422 = vlaneseq
        %v423 = vshrl.u32 %v422, 7
        %v424 = vsub.s32 0, %v423
        %v425 = vrot.slane %v421, %v424
        %v426 = vadd.f32 %v420, %v425
        %v427 = vand.u32 2147483647, %v310
        %vm428 = vcmp.le.f32.partialorder %v427, 0.7853982
        %vm429 = vcmp.lt.s32.totalorder %v310, 0
        %v430 = vand.u32 %v310, 2139095040
        %v431 = vshrl.u32 %v430, 23
        %v432 = vsub.s32 %v431, 127
        %v433 = vand.u32 2147483647, %v310
        %v434 = vand.u32 %v433, 8388607
        %v435 = vor.u32 %v434, 8388608
        %v436 = vsub.s32 0, %v435
        %v437 = vadd.s32 %v432, 1
        %vm438 = vcmp.gt.s32.totalorder %v437, 0
        %v439 = vsel %vm438, %v437, 0
        %v440 = vshrl.u32 %v439, 5
        %v441 = vand.u32 %v439, 31
        %v442 = vsub.s32 32, %v441
        %v443 = vshrl.u32 683565275, %v442
        %v444 = vshll.u32 683565275, %v441
        %v445 = vshrl.u32 2475754826, %v442
        %v446 = vor.u32 %v444, %v445
        %v447 = vshll.u32 2475754826, %v441
        %v448 = vshrl.u32 2131351028, %v442
        %v449 = vor.u32 %v447, %v448
        %v450 = vshll.u32 2131351028, %v441
        %v451 = vshrl.u32 2102212464, %v442
        %v452 = vor.u32 %v450, %v451
        %v453 = vshll.u32 2102212464, %v441
        %v454 = vshrl.u32 920167782, %v442
        %v455 = vor.u32 %v453, %v454
        %v456 = vshll.u32 920167782, %v441
        %v457 = vshrl.u32 1326507024, %v442
        %v458 = vor.u32 %v456, %v457
        %vm459 = vcmp.lt.s32.totalorder %v440, 1
        %vm460 = vcmp.lt.s32.totalorder %v440, 2
        %vm461 = vcmp.lt.s32.totalorder %v440, 3
        %vm462 = vcmp.lt.s32.totalorder %v440, 4
        %v463 = vsel %vm459, %v443, %v446
        %v464 = vsel %vm462, %v452, 2102212464
        %v465 = vsel %vm461, %v449, %v464
        %v466 = vsel %vm460, %v463, %v465
        %v467 = vsel %vm459, %v446, %v449
        %v468 = vsel %vm462, %v455, 920167782
        %v469 = vsel %vm461, %v452, %v468
        %v470 = vsel %vm460, %v467, %v469
        %v471 = vsel %vm459, %v449, %v452
        %v472 = vsel %vm462, %v458, 1326507024
        %v473 = vsel %vm461, %v455, %v472
        %v474 = vsel %vm460, %v471, %v473
        %v475 = vshll.u32 %v435, 8
        %v476 = vmul.u32.u64.compose %v475, %v474
        %v477 = vextract.low.u32 %v476
        %v478 = vextract.high.u32 %v476
        %v479 = vmul.u32.u64.compose %v475, %v470
        %v480 = vextract.low.u32 %v479
        %v481 = vextract.high.u32 %v479
        %v482 = vmul.u32 %v475, %v466
        %v483 = vadd.s32 %v478, %v480
        %vm484 = vc.u32 %v478, %v480
        %v485 = vadd.s32 %v481, 1
        %v486 = vsel %vm484, %v485, %v481
        %v487 = vadd.s32 %v482, %v486
        %v488 = vadd.s32 %v487, 536870912
        %v489 = vshrl.u32 %v488, 30
        %v490 = vshll.u32 %v489, 30
        %v491 = vsub.s32 %v487, %v490
        %vm492 = vcmp.lt.s32.totalorder %v491, 0
        %v493 = vsub.s32 0, %v491
        %v494 = vsel %vm492, %v493, %v491
        %v495 = vclz %v494
        %v496 = vsub.s32 %v495, 2
        %vm497 = vcmp.gt.s32.totalorder 0, %v496
        %v498 = vsel %vm497, 0, %v496
        %v499 = vsub.s32 32, %v498
        %v500 = vshll.u32 %v491, %v498
        %v501 = vshrl.u32 %v483, %v499
        %v502 = vor.u32 %v500, %v501
        %v503 = vsub.s32 4294967266, %v498
        %v504 = vadd.s32 %v503, 127
        %v505 = vshll.u32 %v504, 23
        %v506 = vor.u32 4788187, %v505
        %v507 = vand.u32 2147483647, %v506
        %v509 = vcvt.s32.f32 %v502
        %v510 = vmul.f32 %v509, %v507
        %v511 = vxor.u32 %v510, 2147483648
        %v512 = vsel %vm429, %v511, %v510
        %v513 = vsub.s32 4, %v489
        %v514 = vsel %vm429, %v513, %v489
        %v515 = vsel %vm428, %v310, %v512
        %v516 = vsel %vm428, 0, %v514
        %v517 = vcosq.f32.pop %v515
        %v518 = vsinq.f32.pop %v515
        %vm519 = vweird.f32 %v310
        %v520 = vand.u32 %v516, 3
        %vm521 = vcmp.lt.s32.totalorder %v520, 2
        %vm522 = vcmp.eq.s32.totalorder %v520, 0
        %v523 = vxor.u32 %v518, 2147483648
        %v524 = vsel %vm522, %v517, %v523
        %vm525 = vcmp.eq.s32.totalorder %v520, 2
        %v526 = vxor.u32 %v517, 2147483648
        %v527 = vsel %vm525, %v526, %v518
        %v528 = vsel %vm521, %v524, %v527
        %v529 = vsel %vm519, nan, %v528
        %v530 = vld [vmem:[#allocation2 + $0x4] sm:$0x1]
        %v531 = vlaneseq
        %v532 = vshrl.u32 %v531, 7
        %v533 = vsub.s32 0, %v532
        %v534 = vrot.slane %v530, %v533
        %v535 = vmul.f32 %v529, %v534
        %v536 = vld [vmem:[#allocation2 + $0x5] sm:$0x1]
        %v537 = vlaneseq
        %v538 = vshrl.u32 %v537, 7
        %v539 = vsub.s32 0, %v538
        %v540 = vrot.slane %v536, %v539
        %v541 = vadd.f32 %v535, %v540
        %v542 = vld [vmem:[%s249] sm:$0xff]
        %v543 = vadd.f32 %v542, %v426
        %vm544 = vcmask 261120
        %545 = vst.msk [vmem:[%s285] sm:$0xff] %vm544, %v543
        %v546 = vld [vmem:[%s258] sm:$0xff]
        %v547 = vadd.f32 %v546, %v541
        %548 = vst.msk [vmem:[%s292] sm:$0xff] %vm544, %v547
        %s549 = sand.u32 %s125, 1
        %s550 = scalar_lea.sflag [#allocation4], %s549
        %s551 = sand.u32 %s125, 1
        %s552 = smul.addr %s551, 8
        %s553 = scalar_lea.vmem [#allocation8], %s552
        %s554 = sand.u32 %s153, 1
        %s555 = scalar_lea.sflag [#allocation10], %s554
        %s556 = sand.u32 %s153, 1
        %s557 = smul.addr %s556, 8
        %s558 = scalar_lea.vmem [#allocation9], %s557
        // Predicated region
        $region45: #{tpu_custom_call.1} parent=31 // pred_check
          %p559 = pneg %p135
        $region46: #{tpu_custom_call.1} parent=31 // pred_check_branch
          %561 = sbr.rel (%p559) target = $region48
        $region47: #{tpu_custom_call.1} parent=31 // pred_region
          %s563 = ssub.s32 128, 128
          %564 = vsyncadd %s550, %s563
          %s565 = sadd.s32 %s31, %s30
          %s566 = smul.addr %s565, 128
          %s567 = scalar_lea.hbm %s3, %s566
          %s569 = sshll.u32 %s553, 4
          %s570 = int_to_ptr.vmem [resolvable:$true] %s569
          %572 = dma.vmem_to_hbm [thread:$0]  %s570, 128, %s567, %s550
        $region48: #{tpu_custom_call.1} parent=31 // pred_fallthru
          _
        // Predicated region
        $region49: #{tpu_custom_call.1} parent=31 // pred_check
          %p573 = pneg %p163
        $region50: #{tpu_custom_call.1} parent=31 // pred_check_branch
          %575 = sbr.rel (%p573) target = $region52
        $region51: #{tpu_custom_call.1} parent=31 // pred_region
          %s577 = ssub.s32 128, 128
          %578 = vsyncadd %s555, %s577
          %s579 = sadd.s32 %s31, %s30
          %s580 = smul.addr %s579, 128
          %s581 = scalar_lea.hbm %s4, %s580
          %s583 = sshll.u32 %s558, 4
          %s584 = int_to_ptr.vmem [resolvable:$true] %s583
          %586 = dma.vmem_to_hbm [thread:$0]  %s584, 128, %s581, %s555
        $region52: #{tpu_custom_call.1} parent=31 // pred_fallthru
          _
      $region32: #{tpu_custom_call.1} parent=5 // pred_fallthru
        _
      %p587 = scmp.le.s32.totalorder 2, %s21
      // Predicated region
      $region53: #{tpu_custom_call.1} parent=5 // pred_check
        %p588 = pneg %p587
      $region54: #{tpu_custom_call.1} parent=5 // pred_check_branch
        %590 = sbr.rel (%p588) target = $region56
      $region55: #{tpu_custom_call.1} parent=5 // pred_region
        %s591 = ssub.s32 %s21, 2
        // Predicated region
        $region57: #{tpu_custom_call.1} parent=55 // pred_check
          %p592 = pneg %p141
        $region58: #{tpu_custom_call.1} parent=55 // pred_check_branch
          %594 = sbr.rel (%p592) target = $region60
        $region59: #{tpu_custom_call.1} parent=55 // pred_region
          %s595 = sand.u32 %s126, 1
          %s596 = scalar_lea.sflag [#allocation4], %s595
          %s597 = sand.u32 %s126, 1
          %s598 = smul.addr %s597, 8
          %s599 = scalar_lea.vmem [#allocation8], %s598
          %600 = dma.done %s596, 128
        $region60: #{tpu_custom_call.1} parent=55 // pred_fallthru
          _
        // Predicated region
        $region61: #{tpu_custom_call.1} parent=55 // pred_check
          %p601 = pneg %p169
        $region62: #{tpu_custom_call.1} parent=55 // pred_check_branch
          %603 = sbr.rel (%p601) target = $region64
        $region63: #{tpu_custom_call.1} parent=55 // pred_region
          %s604 = sand.u32 %s154, 1
          %s605 = scalar_lea.sflag [#allocation10], %s604
          %s606 = sand.u32 %s154, 1
          %s607 = smul.addr %s606, 8
          %s608 = scalar_lea.vmem [#allocation9], %s607
          %609 = dma.done %s605, 128
        $region64: #{tpu_custom_call.1} parent=55 // pred_fallthru
          _
      $region56: #{tpu_custom_call.1} parent=5 // pred_fallthru
        _
    $region6: #{tpu_custom_call.1} parent=1 // loop_footer
      %s25 = sadd.s32 1, %s21
    $region7: #{tpu_custom_call.1} parent=1 // loop_footer_branch
      %20 = sbr.rel target = $region3
    $region8: #{tpu_custom_call.1} parent=1 // loop_exit
      _
    %610 = vsyncpa [#allocation3], 1
    %s611 = scalar_lea.sflag [#allocation3], 1
    %612 = vsyncpa %s611, 1
    %613 = vsyncpa [#allocation6], 1
    %s614 = scalar_lea.sflag [#allocation6], 1
    %615 = vsyncpa %s614, 1
    %616 = vsyncpa [#allocation4], 1
    %s617 = scalar_lea.sflag [#allocation4], 1
    %618 = vsyncpa %s617, 1
    %619 = vsyncpa [#allocation10], 1
    %s620 = scalar_lea.sflag [#allocation10], 1
    %621 = vsyncpa %s620, 1

</llo_original>
